<compile_context>
chip_gen: v5e
topology: v5e:2x2
jax: 0.10.0
libtpu: 0.0.40
codegen_flags: <defaults>
</compile_context>

<pallas_src>
import jax
import jax.numpy as jnp
from jax.experimental import pallas as pl
from jax.experimental.pallas import tpu as pltpu


def _cdiv(a, b):
    return (a + b - 1) // b


def _round_up(x, m):
    return ((x + m - 1) // m) * m


# ----------------------------- kernel ------------------------------------- #
def critic_kernel(obs_ref, w1t_ref, b1_ref, w2t_ref, b2_ref, w3_ref, b3_ref,
                  out_ref):
    """One batch tile of the critic MLP in natural (batch, feature) layout.

    obs_ref : (tb, obs_dim)   natural HBM layout, no prep pass
    w1t_ref : (obs_dim, h1)   W1 pre-transposed (grid-invariant)
    b1_ref  : (1, h1)         row bias, sublane-broadcast
    w2t_ref : (h1, h2)        W2 pre-transposed
    b2_ref  : (1, h2)
    w3_ref  : (1, h2)         final weight as a row (VPU path, not MXU)
    b3_ref  : (1, 1)
    out_ref : (tb, 1)         value column (4 B/row of output traffic)
    """
    x = obs_ref[...]                                                   # (tb, obs_dim)

    # Layer 1: Linear + ReLU. MXU matmul with f32 accumulation; bias/ReLU f32.
    h = jnp.dot(x, w1t_ref[...], preferred_element_type=jnp.float32)   # (tb, h1)
    h = jnp.maximum(h + b1_ref[...], 0.0)

    # Layer 2: Linear + ReLU.
    h = jnp.dot(h.astype(w2t_ref.dtype), w2t_ref[...],
                preferred_element_type=jnp.float32)                    # (tb, h2)
    h = jnp.maximum(h + b2_ref[...], 0.0)

    # Output layer (out_features == 1): VPU multiply + XLU lane reduction
    # instead of a 1-column MXU matmul (keeps the MXU result path clean).
    v = jnp.sum(h * w3_ref[...], axis=1, keepdims=True) + b3_ref[...]  # (tb, 1)

    out_ref[...] = v.astype(out_ref.dtype)


# ----------------------------- tiling -------------------------------------- #
def _choose_tb(B, cap):
    """Large, sublane-aligned batch tile.

    * small B  -> one tile covering the whole batch (rounded to sublanes)
    * larger B -> at least 2 grid steps (v7x megacore) but tiles as big as
      the cap allows; per-step overhead (~0.35 us) is amortized.
    """
    B8 = _round_up(max(B, 1), 8)
    if B8 <= 256:
        return B8
    return min(cap, _round_up(_cdiv(B8, 2), 128))


# ----------------------------- wrapper ------------------------------------- #
def critic_forward(obs, params, *, tb=None, tb_cap=2048):
    """Runs the critic MLP. obs: (B, obs_dim) f32 or bf16. Returns (B,) f32.

    The obs stream is consumed exactly as stored (no pad/transpose/cast pass in
    HBM). If obs is bf16 (e.g. bf16 rollout buffer) the MXU operands are bf16
    with f32 accumulation; otherwise everything is f32.
    """
    w1, b1, w2, b2, w3, b3 = params
    B, obs_dim = obs.shape
    h1 = w1.shape[0]
    h2 = w2.shape[0]

    compute_dtype = jnp.bfloat16 if obs.dtype == jnp.bfloat16 else jnp.float32

    if tb is None:
        tb = _choose_tb(B, tb_cap)
    assert tb % 8 == 0, "batch tile must be sublane-aligned (multiple of 8)"
    n_tiles = _cdiv(B, tb)

    # Tiny, grid-invariant operand prep (one-time; negligible vs O(B) obs).
    w1t = w1.T.astype(compute_dtype)                      # (obs_dim, h1)
    w2t = w2.T.astype(compute_dtype)                      # (h1, h2)
    b1r = b1.reshape(1, h1).astype(jnp.float32)
    b2r = b2.reshape(1, h2).astype(jnp.float32)
    w3r = w3.reshape(1, h2).astype(jnp.float32)           # row, VPU path
    b3r = b3.reshape(1, 1).astype(jnp.float32)

    flops = 2 * B * (obs_dim * h1 + h1 * h2 + h2)
    bytes_accessed = int(
        obs.size * obs.dtype.itemsize
        + w1t.size * w1t.dtype.itemsize
        + w2t.size * w2t.dtype.itemsize
        + (b1r.size + b2r.size + w3r.size + b3r.size) * 4
        + B * 4)

    out = pl.pallas_call(
        critic_kernel,
        out_shape=jax.ShapeDtypeStruct((B, 1), jnp.float32),
        grid_spec=pltpu.PrefetchScalarGridSpec(
            num_scalar_prefetch=0,
            grid=(n_tiles,),                                   # tile over batch only
            in_specs=[
                pl.BlockSpec((tb, obs_dim), lambda i: (i, 0)),    # obs tile (natural layout)
                pl.BlockSpec((obs_dim, h1), lambda i: (0, 0)),    # W1^T (grid-invariant)
                pl.BlockSpec((1, h1),       lambda i: (0, 0)),    # b1
                pl.BlockSpec((h1, h2),      lambda i: (0, 0)),    # W2^T
                pl.BlockSpec((1, h2),       lambda i: (0, 0)),    # b2
                pl.BlockSpec((1, h2),       lambda i: (0, 0)),    # w3 row
                pl.BlockSpec((1, 1),        lambda i: (0, 0)),    # b3
            ],
            out_specs=pl.BlockSpec((tb, 1), lambda i: (i, 0)),    # value column
        ),
        compiler_params=pltpu.CompilerParams(
            dimension_semantics=("parallel",)),                   # megacore-shardable
        cost_estimate=pl.CostEstimate(
            flops=flops, transcendentals=0, bytes_accessed=bytes_accessed),
    )(obs, w1t, b1r, w2t, b2r, w3r, b3r)

    return out[:, 0]  # torch .squeeze(-1)


def critic_value(obs, params, *, min_pallas_batch=1024, tb=None, tb_cap=2048):
    """Production dispatcher: below ~1K rows the Pallas call is pure launch /
    prep overhead, so a fused XLA MLP is as fast or faster."""
    if obs.shape[0] < min_pallas_batch:
        return critic_reference(obs, params)
    return critic_forward(obs, params, tb=tb, tb_cap=tb_cap)


# ------------------------ deterministic params ----------------------------- #
def init_critic_params(key, obs_dim, hidden_sizes):
    """Deterministic synthetic init, torch nn.Linear layout: W=(out,in), b=(out,)."""
    sizes = [obs_dim] + list(hidden_sizes) + [1]
    gains = [jnp.sqrt(2.0)] * len(hidden_sizes) + [1.0]
    params = []
    for i, (fan_in, fan_out) in enumerate(zip(sizes[:-1], sizes[1:])):
        key, wk = jax.random.split(key)
        scale = gains[i] / jnp.sqrt(jnp.float32(fan_in))
        w = scale * jax.random.normal(wk, (fan_out, fan_in), dtype=jnp.float32)
        b = jnp.zeros((fan_out,), dtype=jnp.float32)
        params.extend([w, b])
    return tuple(params)


def critic_reference(obs, params):
    """Pure-JAX reference of the same forward pass (accurate f32 dots)."""
    w1, b1, w2, b2, w3, b3 = params
    hp = jax.lax.Precision.HIGHEST
    obs = obs.astype(jnp.float32)
    h = jnp.maximum(jnp.dot(obs, w1.T, precision=hp) + b1, 0.0)
    h = jnp.maximum(jnp.dot(h, w2.T, precision=hp) + b2, 0.0)
    v = jnp.dot(h, w3.T, precision=hp) + b3
    return v[:, 0]


# ------------------------------- main -------------------------------------- #
if __name__ == "__main__":
    OBS_DIM = 32
    HIDDEN = (64, 64)

    key = jax.random.PRNGKey(0)
    key, pk = jax.random.split(key)
    params = init_critic_params(pk, OBS_DIM, HIDDEN)

    # Small per-step batch: single tile, no padding/ragged masking.
    B = 16
    key, ok = jax.random.split(key)
    obs = jax.random.normal(ok, (B, OBS_DIM), dtype=jnp.float32)
    ref = critic_reference(obs, params)
    v = jax.block_until_ready(critic_forward(obs, params))
    assert v.shape == (B,), v.shape
    assert jnp.allclose(v, ref, atol=2e-4, rtol=2e-4), "f32 mismatch (small B)"

    # Non-tile-aligned batch: exercises the 2-step grid + ragged tail path.
    B2 = 300
    key, ok2 = jax.random.split(key)
    obs2 = jax.random.normal(ok2, (B2, OBS_DIM), dtype=jnp.float32)
    ref2 = critic_reference(obs2, params)
    v2 = jax.block_until_ready(critic_forward(obs2, params))
    assert v2.shape == (B2,), v2.shape
    assert jnp.allclose(v2, ref2, atol=2e-4, rtol=2e-4), "f32 mismatch (ragged B)"

    # bf16 obs stream (as if the rollout buffer stored bf16 upstream): halves
    # the only O(B) HBM read; all VPU/XLU work and accumulation stay f32.
    v_bf16 = jax.block_until_ready(
        critic_forward(obs2.astype(jnp.bfloat16), params))
    assert v_bf16.shape == (B2,), v_bf16.shape
    assert jnp.allclose(v_bf16, ref2, atol=7.5e-2, rtol=7.5e-2), \
        "bf16 mismatch vs reference"

    print("KERNEL_OK")
</pallas_src>

<mosaic_0001>
module attributes {stable_mosaic.version = 11 : i64} {
  func.func @critic_kernel(%arg0: i32, %arg1: memref<16x32xf32, #tpu.memory_space<vmem>>, %arg2: memref<32x64xf32, #tpu.memory_space<vmem>>, %arg3: memref<1x64xf32, #tpu.memory_space<vmem>>, %arg4: memref<64x64xf32, #tpu.memory_space<vmem>>, %arg5: memref<1x64xf32, #tpu.memory_space<vmem>>, %arg6: memref<1x64xf32, #tpu.memory_space<vmem>>, %arg7: memref<1x1xf32, #tpu.memory_space<vmem>>, %arg8: memref<16x1xf32, #tpu.memory_space<vmem>>) attributes {dimension_semantics = [#tpu.dimension_semantics<parallel>], iteration_bounds = array<i64: 1>, scalar_prefetch = 0 : i64, scratch_operands = 0 : i64, tpu.core_type = #tpu.core_type<tc>, window_params = [{transform_indices = @transform_0, window_bounds = array<i64: 16, 32>}, {pipeline_mode = #tpu.pipeline_mode<synchronous>, transform_indices = @transform_1, window_bounds = array<i64: 32, 64>}, {pipeline_mode = #tpu.pipeline_mode<synchronous>, transform_indices = @transform_2, window_bounds = array<i64: 1, 64>}, {pipeline_mode = #tpu.pipeline_mode<synchronous>, transform_indices = @transform_3, window_bounds = array<i64: 64, 64>}, {pipeline_mode = #tpu.pipeline_mode<synchronous>, transform_indices = @transform_4, window_bounds = array<i64: 1, 64>}, {pipeline_mode = #tpu.pipeline_mode<synchronous>, transform_indices = @transform_5, window_bounds = array<i64: 1, 64>}, {pipeline_mode = #tpu.pipeline_mode<synchronous>, transform_indices = @transform_6, window_bounds = array<i64: 1, 1>}, {transform_indices = @transform_7, window_bounds = array<i64: 16, 1>}]} {
    %c0 = arith.constant 0 : index
    %c0_0 = arith.constant 0 : index
    %0 = vector.load %arg1[%c0, %c0_0] : memref<16x32xf32, #tpu.memory_space<vmem>>, vector<16x32xf32>
    %c0_1 = arith.constant 0 : index
    %c0_2 = arith.constant 0 : index
    %1 = vector.load %arg2[%c0_1, %c0_2] : memref<32x64xf32, #tpu.memory_space<vmem>>, vector<32x64xf32>
    %cst = arith.constant dense<0.000000e+00> : vector<16x64xf32>
    %2 = tpu.matmul %0, %1, %cst {dimension_numbers = #tpu.dot_dimension_numbers<[1], [0], [0], [1], [0, 0, 1, 1], [], []>} : vector<16x32xf32>, vector<32x64xf32>, vector<16x64xf32> -> vector<16x64xf32>
    %c0_3 = arith.constant 0 : index
    %c0_4 = arith.constant 0 : index
    %3 = vector.load %arg3[%c0_3, %c0_4] : memref<1x64xf32, #tpu.memory_space<vmem>>, vector<1x64xf32>
    %4 = vector.broadcast %3 : vector<1x64xf32> to vector<16x64xf32>
    %5 = arith.addf %2, %4 : vector<16x64xf32>
    %cst_5 = arith.constant 0.000000e+00 : f32
    %6 = vector.broadcast %cst_5 : f32 to vector<16x64xf32>
    %7 = arith.maximumf %5, %6 : vector<16x64xf32>
    %c0_6 = arith.constant 0 : index
    %c0_7 = arith.constant 0 : index
    %8 = vector.load %arg4[%c0_6, %c0_7] : memref<64x64xf32, #tpu.memory_space<vmem>>, vector<64x64xf32>
    %cst_8 = arith.constant dense<0.000000e+00> : vector<16x64xf32>
    %9 = tpu.matmul %7, %8, %cst_8 {dimension_numbers = #tpu.dot_dimension_numbers<[1], [0], [0], [1], [0, 0, 1, 1], [], []>} : vector<16x64xf32>, vector<64x64xf32>, vector<16x64xf32> -> vector<16x64xf32>
    %c0_9 = arith.constant 0 : index
    %c0_10 = arith.constant 0 : index
    %10 = vector.load %arg5[%c0_9, %c0_10] : memref<1x64xf32, #tpu.memory_space<vmem>>, vector<1x64xf32>
    %11 = vector.broadcast %10 : vector<1x64xf32> to vector<16x64xf32>
    %12 = arith.addf %9, %11 : vector<16x64xf32>
    %cst_11 = arith.constant 0.000000e+00 : f32
    %13 = vector.broadcast %cst_11 : f32 to vector<16x64xf32>
    %14 = arith.maximumf %12, %13 : vector<16x64xf32>
    %c0_12 = arith.constant 0 : index
    %c0_13 = arith.constant 0 : index
    %15 = vector.load %arg6[%c0_12, %c0_13] : memref<1x64xf32, #tpu.memory_space<vmem>>, vector<1x64xf32>
    %16 = vector.broadcast %15 : vector<1x64xf32> to vector<16x64xf32>
    %17 = arith.mulf %14, %16 : vector<16x64xf32>
    %cst_14 = arith.constant dense<0.000000e+00> : vector<16xf32>
    %18 = vector.multi_reduction <add>, %17, %cst_14 [1] : vector<16x64xf32> to vector<16xf32>
    %19 = vector.shape_cast %18 : vector<16xf32> to vector<16x1xf32>
    %c0_15 = arith.constant 0 : index
    %c0_16 = arith.constant 0 : index
    %20 = vector.load %arg7[%c0_15, %c0_16] : memref<1x1xf32, #tpu.memory_space<vmem>>, vector<1x1xf32>
    %21 = vector.broadcast %20 : vector<1x1xf32> to vector<16x1xf32>
    %22 = arith.addf %19, %21 : vector<16x1xf32>
    %c0_17 = arith.constant 0 : index
    %c0_18 = arith.constant 0 : index
    %23 = vector.load %arg8[%c0_17, %c0_18] : memref<16x1xf32, #tpu.memory_space<vmem>>, vector<16x1xf32>
    tpu.vector_store %arg8[%c0_17, %c0_18], %22 {strides = array<i32>} : memref<16x1xf32, #tpu.memory_space<vmem>>, vector<16x1xf32>,
    return
  }
  func.func @transform_0(%arg0: i32) -> (i32, i32) {
    %c0_i32 = arith.constant 0 : i32
    %c0_i32_0 = arith.constant 0 : i32
    return %arg0, %c0_i32 : i32, i32
  }
  func.func @transform_1(%arg0: i32) -> (i32, i32) {
    %c0_i32 = arith.constant 0 : i32
    %c0_i32_0 = arith.constant 0 : i32
    %c0_i32_1 = arith.constant 0 : i32
    return %c0_i32, %c0_i32_0 : i32, i32
  }
  func.func @transform_2(%arg0: i32) -> (i32, i32) {
    %c0_i32 = arith.constant 0 : i32
    %c0_i32_0 = arith.constant 0 : i32
    %c0_i32_1 = arith.constant 0 : i32
    return %c0_i32, %c0_i32_0 : i32, i32
  }
  func.func @transform_3(%arg0: i32) -> (i32, i32) {
    %c0_i32 = arith.constant 0 : i32
    %c0_i32_0 = arith.constant 0 : i32
    %c0_i32_1 = arith.constant 0 : i32
    return %c0_i32, %c0_i32_0 : i32, i32
  }
  func.func @transform_4(%arg0: i32) -> (i32, i32) {
    %c0_i32 = arith.constant 0 : i32
    %c0_i32_0 = arith.constant 0 : i32
    %c0_i32_1 = arith.constant 0 : i32
    return %c0_i32, %c0_i32_0 : i32, i32
  }
  func.func @transform_5(%arg0: i32) -> (i32, i32) {
    %c0_i32 = arith.constant 0 : i32
    %c0_i32_0 = arith.constant 0 : i32
    %c0_i32_1 = arith.constant 0 : i32
    return %c0_i32, %c0_i32_0 : i32, i32
  }
  func.func @transform_6(%arg0: i32) -> (i32, i32) {
    %c0_i32 = arith.constant 0 : i32
    %c0_i32_0 = arith.constant 0 : i32
    %c0_i32_1 = arith.constant 0 : i32
    return %c0_i32, %c0_i32_0 : i32, i32
  }
  func.func @transform_7(%arg0: i32) -> (i32, i32) {
    %c0_i32 = arith.constant 0 : i32
    %c0_i32_0 = arith.constant 0 : i32
    return %arg0, %c0_i32 : i32, i32
  }
}

</mosaic_0001>

<llo_original>
// kernel: tpu_custom_call.1
$region0: #{tpu_custom_call.1}
  #allocation0 [shape = 'u32[]', space=smem, size = 0x4, offset = 0x4, fixed_abs, tag = 'smem constant byte address 0x4 - core index']
  #allocation1 [shape = 'u32[72,128]{1,0:T(1,128)}', space=vmem, size = 0x9000, scoped, tag = 'internal scratch']
  #allocation2 [shape = 'f32[1,1]{1,0:T(1,128)S(1)}', space=vmem, size = 0x200, scoped, tag = 'scoped memory for tpu_custom_call.1']
  %s0 = inlined_call_operand.hbm [shape: f32[16,32], index: 0, kind: input, shape index: {}]
  %s1 = inlined_call_operand.hbm [shape: f32[32,64], index: 1, kind: input, shape index: {}]
  %s2 = inlined_call_operand.vmem [shape: f32[1,64], index: 2, kind: input, shape index: {}]
  %s3 = inlined_call_operand.hbm [shape: f32[64,64], index: 3, kind: input, shape index: {}]
  %s4 = inlined_call_operand.vmem [shape: f32[1,64], index: 4, kind: input, shape index: {}]
  %s5 = inlined_call_operand.vmem [shape: f32[1,64], index: 5, kind: input, shape index: {}]
  %s6 = inlined_call_operand.<no memory space> [shape: f32[1,1], index: 6, kind: input, shape index: {}]
  %s7 = inlined_call_operand.vmem [shape: f32[16,1], index: 7, kind: output, shape index: {}]
  %s8 = sld [smem:[#allocation0]]
  $region50: #{tpu_custom_call.1} parent=0
    _
  %s10 = ssub.s32 1, %s8
  %s11 = scalar_select 0, %s10, %s8
  %v12 = vstv %s6
  %13 = vst [vmem:[#allocation2] sm:$0x1] %v12
  $region1: #{tpu_custom_call.1} parent=0
    #allocation3 [shape = 'u8[8192]{0}', space=vmem, size = 0x2000, scoped, tag = 'input window, operand 0, single buffered']
    #allocation4 [shape = 's32[1]{0}', space=sflag, size = 0x4, scoped, tag = 'scoped memory for tpu_custom_call.1']
    #allocation5 [shape = 'u8[16384]{0}', space=vmem, size = 0x4000, scoped, tag = 'input window, operand 1, single buffered']
    #allocation6 [shape = 's32[1]{0}', space=sflag, size = 0x4, scoped, tag = 'scoped memory for tpu_custom_call.1']
    #allocation7 [shape = 'u8[32768]{0}', space=vmem, size = 0x8000, scoped, tag = 'input window, operand 3, single buffered']
    %14 = vsyncpa [#allocation4], 0
    %15 = vsyncpa [#allocation6], 0
    // Predicated region
    $region2: #{tpu_custom_call.1} parent=1 // pred_check
      _
    $region3: #{tpu_custom_call.1} parent=1 // pred_check_branch
      %17 = sbr.rel (0) target = $region5
    $region4: #{tpu_custom_call.1} parent=1 // pred_region
      %19 = vsyncadd [#allocation4], 0
      %s20 = sshll.u32 %s0, 4
      %s21 = int_to_ptr.hbm [resolvable:$true] %s20
      %s22 = sshll.u32 [#allocation3], 4
      %s23 = int_to_ptr.vmem [resolvable:$true] %s22
      %28 = dma.hbm_to_vmem [thread:$0]  %s21, 256, %s23, [#allocation4], 128, 128, 8
    $region5: #{tpu_custom_call.1} parent=1 // pred_fallthru
      _
    // Predicated region
    $region6: #{tpu_custom_call.1} parent=1 // pred_check
      _
    $region7: #{tpu_custom_call.1} parent=1 // pred_check_branch
      %30 = sbr.rel (0) target = $region9
    $region8: #{tpu_custom_call.1} parent=1 // pred_region
      %32 = vsyncadd [#allocation6], 0
      %s33 = sshll.u32 %s1, 4
      %s34 = int_to_ptr.hbm [resolvable:$true] %s33
      %s35 = sshll.u32 [#allocation5], 4
      %s36 = int_to_ptr.vmem [resolvable:$true] %s35
      %41 = dma.hbm_to_vmem [thread:$0]  %s34, 512, %s36, [#allocation6], 128, 128, 8
    $region9: #{tpu_custom_call.1} parent=1 // pred_fallthru
      _
    // Predicated region
    $region10: #{tpu_custom_call.1} parent=1 // pred_check
      _
    $region11: #{tpu_custom_call.1} parent=1 // pred_check_branch
      %43 = sbr.rel (0) target = $region13
    $region12: #{tpu_custom_call.1} parent=1 // pred_region
      _
    $region13: #{tpu_custom_call.1} parent=1 // pred_fallthru
      _
    // Predicated region
    $region14: #{tpu_custom_call.1} parent=1 // pred_check
      _
    $region15: #{tpu_custom_call.1} parent=1 // pred_check_branch
      %45 = sbr.rel (0) target = $region17
    $region16: #{tpu_custom_call.1} parent=1 // pred_region
      %47 = vsyncadd [#allocation6], 0
      %s48 = sshll.u32 %s3, 4
      %s49 = int_to_ptr.hbm [resolvable:$true] %s48
      %s50 = sshll.u32 [#allocation7], 4
      %s51 = int_to_ptr.vmem [resolvable:$true] %s50
      %56 = dma.hbm_to_vmem [thread:$0]  %s49, 1024, %s51, [#allocation6], 128, 128, 8
    $region17: #{tpu_custom_call.1} parent=1 // pred_fallthru
      _
    // Predicated region
    $region18: #{tpu_custom_call.1} parent=1 // pred_check
      _
    $region19: #{tpu_custom_call.1} parent=1 // pred_check_branch
      %58 = sbr.rel (0) target = $region21
    $region20: #{tpu_custom_call.1} parent=1 // pred_region
      _
    $region21: #{tpu_custom_call.1} parent=1 // pred_fallthru
      _
    // Predicated region
    $region22: #{tpu_custom_call.1} parent=1 // pred_check
      _
    $region23: #{tpu_custom_call.1} parent=1 // pred_check_branch
      %60 = sbr.rel (0) target = $region25
    $region24: #{tpu_custom_call.1} parent=1 // pred_region
      _
    $region25: #{tpu_custom_call.1} parent=1 // pred_fallthru
      _
    // Predicated region
    $region26: #{tpu_custom_call.1} parent=1 // pred_check
      _
    $region27: #{tpu_custom_call.1} parent=1 // pred_check_branch
      %62 = sbr.rel (0) target = $region29
    $region28: #{tpu_custom_call.1} parent=1 // pred_region
      _
    $region29: #{tpu_custom_call.1} parent=1 // pred_fallthru
      _
    // Predicated region
    $region30: #{tpu_custom_call.1} parent=1 // pred_check
      _
    $region31: #{tpu_custom_call.1} parent=1 // pred_check_branch
      %64 = sbr.rel (0) target = $region33
    $region32: #{tpu_custom_call.1} parent=1 // pred_region
      %66 = dma.done [#allocation4], 256
    $region33: #{tpu_custom_call.1} parent=1 // pred_fallthru
      _
    // Predicated region
    $region34: #{tpu_custom_call.1} parent=1 // pred_check
      _
    $region35: #{tpu_custom_call.1} parent=1 // pred_check_branch
      %68 = sbr.rel (0) target = $region37
    $region36: #{tpu_custom_call.1} parent=1 // pred_region
      %70 = dma.done [#allocation6], 512
    $region37: #{tpu_custom_call.1} parent=1 // pred_fallthru
      _
    // Predicated region
    $region38: #{tpu_custom_call.1} parent=1 // pred_check
      _
    $region39: #{tpu_custom_call.1} parent=1 // pred_check_branch
      %72 = sbr.rel (0) target = $region41
    $region40: #{tpu_custom_call.1} parent=1 // pred_region
      %74 = dma.done [#allocation6], 1024
    $region41: #{tpu_custom_call.1} parent=1 // pred_fallthru
      _
    %v75 = vld [vmem:[#allocation3] sm:$0xff]
    %v76 = vld [vmem:[#allocation3 + $0x8] sm:$0xff]
    %v77 = vld [vmem:[#allocation5] sm:$0xff]
    %v78 = vld [vmem:[#allocation5 + $0x8] sm:$0xff]
    %v79 = vld [vmem:[#allocation5 + $0x10] sm:$0xff]
    %v80 = vld [vmem:[#allocation5 + $0x18] sm:$0xff]
    %v81 = vld [vmem:[%s2] sm:$0x1]
    %v83 = vperm.slane %v81, 0
    %vm85 = vcmask 261120
    %v87 = vsel %vm85, %v75, 0
    %v90 = vsel %vm85, %v76, 0
    %92 = vmatpush.msra.mxu0 0.0
    %93 = vmatpush.msra.mxu0 0.0
    %94 = vmatpush.msra.mxu0 0.0
    %95 = vmatpush.msra.mxu0 0.0
    %96 = vmatpush.msra.mxu0 0.0
    %97 = vmatpush.msra.mxu0 0.0
    %98 = vmatpush.msra.mxu0 0.0
    %99 = vmatpush.msra.mxu0 0.0
    %100 = vmatpush.msra.mxu0 0.0
    %101 = vmatpush.msra.mxu0 0.0
    %102 = vmatpush.msra.mxu0 0.0
    %103 = vmatpush.msra.mxu0 0.0
    %104 = vmatpush.msra.mxu0 %v80
    %105 = vmatpush.msra.mxu0 %v79
    %106 = vmatpush.msra.mxu0 %v78
    %107 = vmatpush.msra.mxu0 %v77
    %108 = vmatmul.f32.gmra.mxu0 %v87
    %v109 = vpop.f32.mrf.mxu0
    %v110 = vadd.f32 %v83, %v109
    %111 = vmatmul.f32.gmra.mxu0 %v90
    %v112 = vpop.f32.mrf.mxu0
    %v113 = vadd.f32 %v83, %v112
    %114 = vdwg.mxu0
    %v115 = vmax.f32 %v110, 0.0
    %v116 = vmax.f32 %v113, 0.0
    %v117 = vld [vmem:[#allocation7] sm:$0xff]
    %v118 = vld [vmem:[#allocation7 + $0x8] sm:$0xff]
    %v119 = vld [vmem:[#allocation7 + $0x10] sm:$0xff]
    %v120 = vld [vmem:[#allocation7 + $0x18] sm:$0xff]
    %v121 = vld [vmem:[#allocation7 + $0x20] sm:$0xff]
    %v122 = vld [vmem:[#allocation7 + $0x28] sm:$0xff]
    %v123 = vld [vmem:[#allocation7 + $0x30] sm:$0xff]
    %v124 = vld [vmem:[#allocation7 + $0x38] sm:$0xff]
    %v125 = vld [vmem:[%s4] sm:$0x1]
    %v127 = vperm.slane %v125, 0
    %vm129 = vcmask 523264
    %v131 = vsel %vm129, %v115, 0
    %v134 = vsel %vm129, %v116, 0
    %136 = vmatpush.msra.mxu0 0.0
    %137 = vmatpush.msra.mxu0 0.0
    %138 = vmatpush.msra.mxu0 0.0
    %139 = vmatpush.msra.mxu0 0.0
    %140 = vmatpush.msra.mxu0 0.0
    %141 = vmatpush.msra.mxu0 0.0
    %142 = vmatpush.msra.mxu0 0.0
    %143 = vmatpush.msra.mxu0 0.0
    %144 = vmatpush.msra.mxu0 %v124
    %145 = vmatpush.msra.mxu0 %v123
    %146 = vmatpush.msra.mxu0 %v122
    %147 = vmatpush.msra.mxu0 %v121
    %148 = vmatpush.msra.mxu0 %v120
    %149 = vmatpush.msra.mxu0 %v119
    %150 = vmatpush.msra.mxu0 %v118
    %151 = vmatpush.msra.mxu0 %v117
    %152 = vmatmul.f32.gmra.mxu0 %v131
    %v153 = vpop.f32.mrf.mxu0
    %v154 = vadd.f32 %v127, %v153
    %155 = vmatmul.f32.gmra.mxu0 %v134
    %v156 = vpop.f32.mrf.mxu0
    %v157 = vadd.f32 %v127, %v156
    %158 = vdwg.mxu0
    %v159 = vmax.f32 %v154, 0.0
    %v160 = vmax.f32 %v157, 0.0
    %v161 = vld [vmem:[%s5] sm:$0x1]
    %v163 = vperm.slane %v161, 0
    %v165 = vmul.f32 %v159, %v163
    %v166 = vmul.f32 %v160, %v163
    %v167 = vsel %vm129, %v165, 0.0
    %168 = vadd.xlane.f32.xlu0 %v167
    %v169 = vpop.xlane.xlu0 %168
    %v170 = vsel %vm129, %v166, 0.0
    %171 = vadd.xlane.f32.xlu0 %v170
    %v172 = vpop.xlane.xlu0 %171
    %v173 = vld [vmem:[#allocation2] sm:$0x1]
    %v175 = vperm.slane %v173, 0
    %v177 = vadd.f32 %v169, %v175
    %v178 = vadd.f32 %v172, %v175
    %vm179 = vcmask 7168
    %180 = vst.msk [vmem:[%s7] sm:$0xff] %vm179, %v177
    %181 = vst.msk [vmem:[%s7 + $0x8] sm:$0xff] %vm179, %v178
    // Predicated region
    $region42: #{tpu_custom_call.1} parent=1 // pred_check
      _
    $region43: #{tpu_custom_call.1} parent=1 // pred_check_branch
      %183 = sbr.rel (0) target = $region45
    $region44: #{tpu_custom_call.1} parent=1 // pred_region
      _
    $region45: #{tpu_custom_call.1} parent=1 // pred_fallthru
      _
    // Predicated region
    $region46: #{tpu_custom_call.1} parent=1 // pred_check
      _
    $region47: #{tpu_custom_call.1} parent=1 // pred_check_branch
      %185 = sbr.rel (0) target = $region49
    $region48: #{tpu_custom_call.1} parent=1 // pred_region
      _
    $region49: #{tpu_custom_call.1} parent=1 // pred_fallthru
      _
    %186 = vsyncpa [#allocation4], 1
    %187 = vsyncpa [#allocation6], 1

</llo_original>
